<compile_context>
chip_gen: v7x
topology: tpu7x:2x2x1
jax: 0.10.0
libtpu: 0.0.40
codegen_flags: <defaults>
</compile_context>

<pallas_src>
from collections import OrderedDict

import jax
import jax.numpy as jnp
from jax.experimental import pallas as pl
from jax.experimental.pallas import tpu as pltpu


_SMALL_INPUT_BYPASS_BYTES = 1 << 20   # below this, kernel launch cost dominates


def _copy_kernel(x_ref, o_ref):
    # Pure pass-through: one VMEM tile in, same tile out.
    o_ref[...] = x_ref[...]


def _sublane_align(dtype) -> int:
    # Sub-32-bit dtypes pack along sublanes: 8 rows for 4-byte element types,
    # 16 for 2-byte (bf16/fp16), 32 for 1-byte (int8/fp8).
    itemsize = jnp.dtype(dtype).itemsize
    return max(8, 32 // max(1, itemsize))


def _vmem_capacity_bytes() -> int:
    """Physical VMEM of this generation; conservative fallback if unqueryable."""
    try:
        cap = int(pltpu.get_tpu_info().vmem_capacity_bytes)
        if cap > 0:
            return cap
    except Exception:
        pass
    return 64 << 20   # v7x per-TC VMEM; legal lower bound on every generation


def _pick_tile(dim: int, align: int, max_tile: int) -> int:
    """Largest align-multiple tile <= max_tile; prefer one dividing dim evenly."""
    if dim <= max_tile:
        return dim
    max_tile = max(align, (max_tile // align) * align)
    t = max_tile
    floor = max(align, max_tile // 2)
    while t >= floor:
        if dim % t == 0:
            return t            # even division: no masked-store epilogue block
        t -= align
    return max_tile


def _lane_dense_2d(x):
    """Return (x2d, pad_elems): lane-dense [rows, cols] view with cols % 128 == 0."""
    total = int(x.size)
    feat = int(x.shape[-1]) if x.ndim else 1
    if feat >= 128 and feat % 128 == 0:
        return x.reshape(total // feat, feat), 0
    # A pure copy has no per-row semantics, so we are free to pick the layout:
    # prefer a wide lane axis for unmasked full-width vector stores.
    for width in (2048, 1024, 512, 256, 128):
        if total % width == 0:
            return x.reshape(total // width, width), 0
    # Odd element count: pad the flat view up to a lane multiple (copied padded,
    # sliced off afterwards) so the copy stays gridded and lane-dense.
    pad = (-total) % 128
    flat = jnp.pad(x.reshape(-1), (0, pad))
    return flat.reshape((total + pad) // 128, 128), pad


def _semantics_attempts():
    """Preference-ordered dimension_semantics for the (rows, cols) grid."""
    attempts = []
    core_parallel = getattr(pltpu, "CORE_PARALLEL", None)
    arbitrary = getattr(pltpu, "ARBITRARY", "arbitrary")
    if core_parallel is not None:
        # v7x: shard the row axis across both TensorCores (each with its own
        # ~3.2 TB/s HBM path).  Plain "parallel" does not change codegen.
        attempts.append((core_parallel, arbitrary))
    attempts.append(("parallel", "arbitrary"))   # proven-good fallback (1-TC chips)
    return attempts


def pallas_identity_copy(x, *, min_bytes_for_kernel=_SMALL_INPUT_BYPASS_BYTES):
    """Materialize a bit-exact copy of `x` with a Pallas TPU streaming kernel."""
    if x.size == 0:
        return x
    itemsize = jnp.dtype(x.dtype).itemsize
    if int(x.size) * itemsize < min_bytes_for_kernel:
        # Tiny input: fixed pallas_call launch cost dominates any kernel tuning.
        return jnp.copy(x)

    orig_shape = x.shape
    total = int(x.size)
    x2d, pad = _lane_dense_2d(x)
    rows, cols = int(x2d.shape[0]), int(x2d.shape[1])
    sub = _sublane_align(x.dtype)

    # Per-generation tile budget: ~1/6 of physical VMEM (double-buffered in+out
    # tiles = 4x the tile, plus compiler headroom), clamped to [4 MiB, 16 MiB].
    #   128 MiB VMEM (v5e/v6e) -> 16 MiB tiles; 64 MiB VMEM (v7x) -> 8 MiB tiles.
    vmem_cap = _vmem_capacity_bytes()
    tile_target = max(4 << 20, min(16 << 20, (vmem_cap - (16 << 20)) // 6))

    # Lane tile: keep full width unless even a minimum-height tile would blow the
    # budget (very wide feature dims); then tile columns in multiples of 128.
    max_cols = max(128, (tile_target // (sub * itemsize) // 128) * 128)
    tile_cols = cols if cols <= max_cols else _pick_tile(cols, 128, max_cols)

    # Row tile: as tall as the budget allows, aligned to dtype sublane packing.
    max_rows = max(sub, (tile_target // (tile_cols * itemsize) // sub) * sub)
    tile_rows = rows if rows <= max_rows else _pick_tile(rows, sub, max_rows)

    tile_bytes = tile_rows * tile_cols * itemsize
    # Dynamic limit: double-buffered input + output tiles plus headroom,
    # never above this generation's physical VMEM.
    vmem_limit = int(min(vmem_cap, max(32 << 20, 4 * tile_bytes + (8 << 20))))
    grid = (pl.cdiv(rows, tile_rows), pl.cdiv(cols, tile_cols))

    def run(semantics):
        return pl.pallas_call(
            _copy_kernel,
            out_shape=jax.ShapeDtypeStruct((rows, cols), x.dtype),
            grid_spec=pltpu.PrefetchScalarGridSpec(
                num_scalar_prefetch=0,
                grid=grid,
                in_specs=[pl.BlockSpec((tile_rows, tile_cols), lambda i, j: (i, j))],
                out_specs=pl.BlockSpec((tile_rows, tile_cols), lambda i, j: (i, j)),
            ),
            compiler_params=pltpu.CompilerParams(
                dimension_semantics=semantics,
                vmem_limit_bytes=vmem_limit,
            ),
        )(x2d)

    out2d = None
    last_err = None
    for semantics in _semantics_attempts():
        try:
            out2d = jax.block_until_ready(run(semantics))
            break
        except Exception as err:   # e.g. CORE_PARALLEL unsupported on this chip/toolchain
            last_err = err
            out2d = None
    if out2d is None:
        raise last_err

    if pad:
        return out2d.reshape(-1)[:total].reshape(orig_shape)
    return out2d.reshape(orig_shape)


class IdentityEmbedder:
    """JAX/Pallas port of the PyTorch IdentityEmbedder."""

    @staticmethod
    def get_default_config(head_normalize=True):
        """Get embedder parameters."""
        return OrderedDict([("head_normalize", head_normalize)])

    def __init__(self, out_features, *, normalizer=None, config=None,
                 materialize_copy=False,
                 min_bytes_for_kernel=_SMALL_INPUT_BYPASS_BYTES):
        cfg = dict(self.get_default_config())
        if config:
            cfg.update(config)
        self._config = cfg
        self._out_features = out_features
        self._normalizer = normalizer if cfg["head_normalize"] else None
        # When True, the identity path returns a freshly materialized buffer
        # produced by the Pallas streaming-copy kernel (otherwise zero-copy).
        self._materialize_copy = materialize_copy
        self._min_bytes_for_kernel = min_bytes_for_kernel

    def __call__(self, embeddings):
        if embeddings.shape[-1] != self._out_features:
            raise ValueError(
                "Expected embeddings with dimension {}, got {}".format(
                    self._out_features, embeddings.shape[-1]
                )
            )
        if self._normalizer is not None:
            return self._normalizer(embeddings)
        if self._materialize_copy:
            return pallas_identity_copy(
                embeddings, min_bytes_for_kernel=self._min_bytes_for_kernel
            )
        # Fast path: identity forward needs no kernel launch and no HBM traffic.
        return embeddings


if __name__ == "__main__":
    key = jax.random.PRNGKey(0)
    batch, seq, out_features = 2, 8, 128
    embeddings = jax.random.normal(key, (batch, seq, out_features), dtype=jnp.float32)

    # 1) Default embedder: pure identity, zero-copy fast path (no kernel launch).
    embedder = IdentityEmbedder(out_features)
    fast = embedder(embeddings)
    assert fast is embeddings

    # Shape validation mirrors the PyTorch module.
    try:
        embedder(jnp.zeros((2, 3, 64), jnp.float32))
        raise AssertionError("expected ValueError for wrong feature dim")
    except ValueError:
        pass

    # 2) Kernel path: Pallas streaming copy (force the kernel for this small demo).
    kernel_embedder = IdentityEmbedder(
        out_features, materialize_copy=True, min_bytes_for_kernel=0
    )
    result = jax.block_until_ready(kernel_embedder(embeddings))
    assert result.shape == embeddings.shape
    assert result.dtype == embeddings.dtype
    assert bool(jnp.all(result == embeddings))

    # 3) Odd element count + sub-32-bit dtype: exercises the padded lane-dense path.
    odd = jax.random.normal(jax.random.PRNGKey(1), (3, 77), dtype=jnp.bfloat16)
    odd_copy = jax.block_until_ready(pallas_identity_copy(odd, min_bytes_for_kernel=0))
    assert odd_copy.shape == odd.shape
    assert odd_copy.dtype == odd.dtype
    assert bool(jnp.all(odd_copy == odd))

    print("KERNEL_OK")
</pallas_src>

<mosaic_0001>
module attributes {stable_mosaic.version = 11 : i64} {
  func.func @_copy_kernel(%arg0: i32, %arg1: i32, %arg2: memref<16x128xf32, #tpu.memory_space<vmem>>, %arg3: memref<16x128xf32, #tpu.memory_space<vmem>>) attributes {dimension_semantics = [#tpu.dimension_semantics<core_parallel>, #tpu.dimension_semantics<arbitrary>], iteration_bounds = array<i64: 1, 1>, scalar_prefetch = 0 : i64, scratch_operands = 0 : i64, tpu.core_type = #tpu.core_type<tc>, window_params = [{transform_indices = @transform_0, window_bounds = array<i64: 16, 128>}, {transform_indices = @transform_1, window_bounds = array<i64: 16, 128>}]} {
    %c0 = arith.constant 0 : index
    %c0_0 = arith.constant 0 : index
    %0 = vector.load %arg2[%c0, %c0_0] : memref<16x128xf32, #tpu.memory_space<vmem>>, vector<16x128xf32>
    %c0_1 = arith.constant 0 : index
    %c0_2 = arith.constant 0 : index
    %1 = vector.load %arg3[%c0_1, %c0_2] : memref<16x128xf32, #tpu.memory_space<vmem>>, vector<16x128xf32>
    tpu.vector_store %arg3[%c0_1, %c0_2], %0 {strides = array<i32>} : memref<16x128xf32, #tpu.memory_space<vmem>>, vector<16x128xf32>,
    return
  }
  func.func @transform_0(%arg0: i32, %arg1: i32) -> (i32, i32) {
    %c0_i32 = arith.constant 0 : i32
    return %arg0, %arg1 : i32, i32
  }
  func.func @transform_1(%arg0: i32, %arg1: i32) -> (i32, i32) {
    %c0_i32 = arith.constant 0 : i32
    return %arg0, %arg1 : i32, i32
  }
}

module attributes {stable_mosaic.version = 11 : i64} {
  func.func @_copy_kernel(%arg0: i32, %arg1: i32, %arg2: memref<16x128xf32, #tpu.memory_space<vmem>>, %arg3: memref<16x128xf32, #tpu.memory_space<vmem>>) attributes {dimension_semantics = [#tpu.dimension_semantics<parallel>, #tpu.dimension_semantics<arbitrary>], iteration_bounds = array<i64: 1, 1>, scalar_prefetch = 0 : i64, scratch_operands = 0 : i64, tpu.core_type = #tpu.core_type<tc>, window_params = [{transform_indices = @transform_0, window_bounds = array<i64: 16, 128>}, {transform_indices = @transform_1, window_bounds = array<i64: 16, 128>}]} {
    %c0 = arith.constant 0 : index
    %c0_0 = arith.constant 0 : index
    %0 = vector.load %arg2[%c0, %c0_0] : memref<16x128xf32, #tpu.memory_space<vmem>>, vector<16x128xf32>
    %c0_1 = arith.constant 0 : index
    %c0_2 = arith.constant 0 : index
    %1 = vector.load %arg3[%c0_1, %c0_2] : memref<16x128xf32, #tpu.memory_space<vmem>>, vector<16x128xf32>
    tpu.vector_store %arg3[%c0_1, %c0_2], %0 {strides = array<i32>} : memref<16x128xf32, #tpu.memory_space<vmem>>, vector<16x128xf32>,
    return
  }
  func.func @transform_0(%arg0: i32, %arg1: i32) -> (i32, i32) {
    %c0_i32 = arith.constant 0 : i32
    return %arg0, %arg1 : i32, i32
  }
  func.func @transform_1(%arg0: i32, %arg1: i32) -> (i32, i32) {
    %c0_i32 = arith.constant 0 : i32
    return %arg0, %arg1 : i32, i32
  }
}

</mosaic_0001>

<llo_original>
// kernel: tpu_custom_call.1
$region0: #{tpu_custom_call.1}
  #allocation0 [shape = 'u32[]', space=smem, size = 0x4, offset = 0x4, fixed_abs, tag = 'smem constant byte address 0x4 - core index']
  #allocation1 [shape = 'u32[144,128]{1,0:T(1,128)}', space=vmem, size = 0x12000, scoped, tag = 'internal scratch']
  %s0 = inlined_call_operand.hbm [shape: f32[16,128], index: 0, kind: input, shape index: {}]
  %s1 = inlined_call_operand.hbm [shape: f32[16,128], index: 1, kind: output, shape index: {}]
  %s2 = sld [smem:[#allocation0]]
  $region18: #{tpu_custom_call.1} parent=0
    _
  %s4 = ssub.s32 1, %s2
  %s5 = scalar_select 0, %s4, %s2
  $region1: #{tpu_custom_call.1} parent=0
    #allocation2 [shape = 'u8[8192]{0}', space=vmem, size = 0x2000, scoped, tag = 'input window, operand 0, single buffered']
    #allocation3 [shape = 's32[1]{0}', space=sflag, size = 0x4, scoped, tag = 'scoped memory for tpu_custom_call.1']
    #allocation4 [shape = 's32[1]{0}', space=sflag, size = 0x4, scoped, tag = 'scoped memory for tpu_custom_call.1']
    #allocation5 [shape = 'u8[8192]{0}', space=vmem, size = 0x2000, scoped, tag = 'output window, operand 0, single buffered']
    %6 = vsyncpa [#allocation3], 0
    %7 = vsyncpa [#allocation4], 0
    // Predicated region
    $region2: #{tpu_custom_call.1} parent=1 // pred_check
      _
    $region3: #{tpu_custom_call.1} parent=1 // pred_check_branch
      %9 = sbr.rel (0) target = $region5
    $region4: #{tpu_custom_call.1} parent=1 // pred_region
      %s10 = smul.u32 2, %s5
      %s12 = ssub.s32 256, 256
      %13 = vsyncadd [#allocation3], %s12
      %s14 = smul.addr %s10, 128
      %s15 = scalar_lea.hbm %s0, %s14
      %s16 = sshll.u32 [#allocation2], 4
      %s17 = int_to_ptr.vmem [resolvable:$true] %s16
      %22 = dma.hbm_to_vmem [thread:$0]  %s15, 256, %s17, [#allocation3], 128, 128, 8
    $region5: #{tpu_custom_call.1} parent=1 // pred_fallthru
      _
    // Predicated region
    $region6: #{tpu_custom_call.1} parent=1 // pred_check
      _
    $region7: #{tpu_custom_call.1} parent=1 // pred_check_branch
      %24 = sbr.rel (0) target = $region9
    $region8: #{tpu_custom_call.1} parent=1 // pred_region
      %25 = dma.done [#allocation3], 256
    $region9: #{tpu_custom_call.1} parent=1 // pred_fallthru
      _
    %s26 = smul.u32 2, %s5
    %s27 = smul.u32 2, %s5
    %v28 = vld [vmem:[#allocation2] sm:$0xff]
    %v29 = vld [vmem:[#allocation2 + $0x8] sm:$0xff]
    %30 = vst [vmem:[#allocation5] sm:$0xff] %v28
    %31 = vst [vmem:[#allocation5 + $0x8] sm:$0xff] %v29
    // Predicated region
    $region10: #{tpu_custom_call.1} parent=1 // pred_check
      _
    $region11: #{tpu_custom_call.1} parent=1 // pred_check_branch
      %33 = sbr.rel (0) target = $region13
    $region12: #{tpu_custom_call.1} parent=1 // pred_region
      %s34 = smul.u32 2, %s5
      %s36 = ssub.s32 256, 256
      %37 = vsyncadd [#allocation4], %s36
      %s38 = smul.addr %s34, 128
      %s39 = scalar_lea.hbm %s1, %s38
      %s40 = sshll.u32 [#allocation5], 4
      %s41 = int_to_ptr.vmem [resolvable:$true] %s40
      %46 = dma.vmem_to_hbm [thread:$0]  %s41, 256, %s39, [#allocation4], 128, 128, 8
    $region13: #{tpu_custom_call.1} parent=1 // pred_fallthru
      _
    // Predicated region
    $region14: #{tpu_custom_call.1} parent=1 // pred_check
      _
    $region15: #{tpu_custom_call.1} parent=1 // pred_check_branch
      %48 = sbr.rel (0) target = $region17
    $region16: #{tpu_custom_call.1} parent=1 // pred_region
      %49 = dma.done [#allocation4], 256
    $region17: #{tpu_custom_call.1} parent=1 // pred_fallthru
      _
    %50 = vsyncpa [#allocation3], 1
    %51 = vsyncpa [#allocation4], 1

// kernel: tpu_custom_call.1
$region0: #{tpu_custom_call.1}
  #allocation0 [shape = 'u32[]', space=smem, size = 0x4, offset = 0x4, fixed_abs, tag = 'smem constant byte address 0x4 - core index']
  #allocation1 [shape = 'u32[144,128]{1,0:T(1,128)}', space=vmem, size = 0x12000, scoped, tag = 'internal scratch']
  %s0 = inlined_call_operand.hbm [shape: f32[16,128], index: 0, kind: input, shape index: {}]
  %s1 = inlined_call_operand.hbm [shape: f32[16,128], index: 1, kind: output, shape index: {}]
  %s2 = sld [smem:[#allocation0]]
  $region18: #{tpu_custom_call.1} parent=0
    _
  %s4 = ssub.s32 1, %s2
  %s5 = scalar_select 0, %s4, %s2
  $region1: #{tpu_custom_call.1} parent=0
    #allocation2 [shape = 'u8[8192]{0}', space=vmem, size = 0x2000, scoped, tag = 'input window, operand 0, single buffered']
    #allocation3 [shape = 's32[1]{0}', space=sflag, size = 0x4, scoped, tag = 'scoped memory for tpu_custom_call.1']
    #allocation4 [shape = 's32[1]{0}', space=sflag, size = 0x4, scoped, tag = 'scoped memory for tpu_custom_call.1']
    #allocation5 [shape = 'u8[8192]{0}', space=vmem, size = 0x2000, scoped, tag = 'output window, operand 0, single buffered']
    %6 = vsyncpa [#allocation3], 0
    %7 = vsyncpa [#allocation4], 0
    // Predicated region
    $region2: #{tpu_custom_call.1} parent=1 // pred_check
      _
    $region3: #{tpu_custom_call.1} parent=1 // pred_check_branch
      %9 = sbr.rel (0) target = $region5
    $region4: #{tpu_custom_call.1} parent=1 // pred_region
      %s11 = ssub.s32 256, 256
      %12 = vsyncadd [#allocation3], %s11
      %s13 = sshll.u32 [#allocation2], 4
      %s14 = int_to_ptr.vmem [resolvable:$true] %s13
      %19 = dma.hbm_to_vmem [thread:$0]  %s0, 256, %s14, [#allocation3], 128, 128, 8
    $region5: #{tpu_custom_call.1} parent=1 // pred_fallthru
      _
    // Predicated region
    $region6: #{tpu_custom_call.1} parent=1 // pred_check
      _
    $region7: #{tpu_custom_call.1} parent=1 // pred_check_branch
      %21 = sbr.rel (0) target = $region9
    $region8: #{tpu_custom_call.1} parent=1 // pred_region
      %22 = dma.done [#allocation3], 256
    $region9: #{tpu_custom_call.1} parent=1 // pred_fallthru
      _
    %v23 = vld [vmem:[#allocation2] sm:$0xff]
    %v24 = vld [vmem:[#allocation2 + $0x8] sm:$0xff]
    %25 = vst [vmem:[#allocation5] sm:$0xff] %v23
    %26 = vst [vmem:[#allocation5 + $0x8] sm:$0xff] %v24
    // Predicated region
    $region10: #{tpu_custom_call.1} parent=1 // pred_check
      _
    $region11: #{tpu_custom_call.1} parent=1 // pred_check_branch
      %28 = sbr.rel (0) target = $region13
    $region12: #{tpu_custom_call.1} parent=1 // pred_region
      %s30 = ssub.s32 256, 256
      %31 = vsyncadd [#allocation4], %s30
      %s32 = sshll.u32 [#allocation5], 4
      %s33 = int_to_ptr.vmem [resolvable:$true] %s32
      %38 = dma.vmem_to_hbm [thread:$0]  %s33, 256, %s1, [#allocation4], 128, 128, 8
    $region13: #{tpu_custom_call.1} parent=1 // pred_fallthru
      _
    // Predicated region
    $region14: #{tpu_custom_call.1} parent=1 // pred_check
      _
    $region15: #{tpu_custom_call.1} parent=1 // pred_check_branch
      %40 = sbr.rel (0) target = $region17
    $region16: #{tpu_custom_call.1} parent=1 // pred_region
      %41 = dma.done [#allocation4], 256
    $region17: #{tpu_custom_call.1} parent=1 // pred_fallthru
      _
    %42 = vsyncpa [#allocation3], 1
    %43 = vsyncpa [#allocation4], 1

</llo_original>
